<compile_context>
chip_gen: v5e
topology: v5e:2x2
jax: 0.10.0
libtpu: 0.0.40
codegen_flags: <defaults>
</compile_context>

<pallas_src>
from functools import partial

import jax
import jax.numpy as jnp
from jax.experimental import pallas as pl
from jax.experimental.pallas import tpu as pltpu


# ---------------------------------------------------------------------------
# Pallas kernel: one fused bilinear grid_sample == one MXU matmul
# ---------------------------------------------------------------------------
def _aug_matmul_kernel(x_ref, wf_ref, out_ref):
    """x_ref: (G, h*w) bf16 unpadded pixels of G image slices
       wf_ref: (h*w, h*w) bf16 fused bilinear weights (replicate pad folded in)
       out_ref: (G, h*w) f32"""
    out_ref[...] = jnp.dot(x_ref[...], wf_ref[...],
                           preferred_element_type=jnp.float32)


# ---------------------------------------------------------------------------
# Sampling-grid construction (faithful to the module, incl. its quirky
# in-place slicing that adds shift_w to BOTH coords of w-column 0 only)
# ---------------------------------------------------------------------------
def _sample_positions(h, w, pad, key):
    Hp, Wp = h + 2 * pad, w + 2 * pad
    eps_h, eps_w = 1.0 / Hp, 1.0 / Wp
    arange_h = jnp.linspace(-1.0 + eps_h, 1.0 - eps_h, Hp, dtype=jnp.float32)[:h]
    arange_w = jnp.linspace(-1.0 + eps_w, 1.0 - eps_w, Wp, dtype=jnp.float32)[:w]
    ah = jnp.tile(arange_h[:, None], (1, w))[:, :, None]            # (h, w, 1)
    aw = jnp.tile(arange_w[None, :], (h, 1))[:, :, None]            # (h, w, 1)
    base_grid = jnp.concatenate([aw, ah], axis=2)                   # (h, w, 2) [x, y]

    # torch.randint(0, 2*pad+1, (1,1,1,2)) — identical for every batch element.
    shift = jax.random.randint(key, (1, 1, 2), 0, 2 * pad + 1).astype(jnp.float32)
    shift_h = shift * 2.0 / Hp
    shift_w = shift * 2.0 / Wp

    # base_grid[:, :, 0:1] += shift_w ; base_grid[:, :, 1:] += shift_h
    # (indexes the *w* axis, not the coordinate axis).
    col0 = base_grid[:, 0:1, :] + shift_w                           # (h, 1, 2)
    rest = base_grid[:, 1:, :] + shift_h                            # (h, w-1, 2)
    grid = jnp.concatenate([col0, rest], axis=1)                    # (h, w, 2)

    gx = grid[..., 0].reshape(-1)                                   # (P,)
    gy = grid[..., 1].reshape(-1)                                   # (P,)

    # align_corners=False unnormalization (matches F.grid_sample).
    ix = ((gx + 1.0) * Wp - 1.0) * 0.5
    iy = ((gy + 1.0) * Hp - 1.0) * 0.5
    return ix, iy


def _fused_weights(h, w, pad, key):
    """(h*w, h*w) fused bilinear weight matrix over the UNPADDED image.

    Replicate padding is folded in by clamping padded corner indices into
    [0, w-1] / [0, h-1]; corners outside the padded image get zero weight
    (padding_mode='zeros')."""
    Hp, Wp = h + 2 * pad, w + 2 * pad
    ix, iy = _sample_positions(h, w, pad, key)

    x0 = jnp.floor(ix)
    fx = ix - x0
    y0 = jnp.floor(iy)
    fy = iy - y0
    x0i = x0.astype(jnp.int32)
    x1i = x0i + 1
    y0i = y0.astype(jnp.int32)
    y1i = y0i + 1

    vx0 = (x0i >= 0) & (x0i < Wp)
    vx1 = (x1i >= 0) & (x1i < Wp)
    vy0 = (y0i >= 0) & (y0i < Hp)
    vy1 = (y1i >= 0) & (y1i < Hp)

    cx0 = jnp.clip(x0i - pad, 0, w - 1)
    cx1 = jnp.clip(x1i - pad, 0, w - 1)
    cy0 = jnp.clip(y0i - pad, 0, h - 1)
    cy1 = jnp.clip(y1i - pad, 0, h - 1)

    wi = jnp.arange(w, dtype=jnp.int32)[:, None]                    # (w, 1)
    hi = jnp.arange(h, dtype=jnp.int32)[:, None]                    # (h, 1)
    WxT = (jnp.where((wi == cx0[None, :]) & vx0[None, :], 1.0 - fx[None, :], 0.0)
           + jnp.where((wi == cx1[None, :]) & vx1[None, :], fx[None, :], 0.0))  # (w, P)
    WyT = (jnp.where((hi == cy0[None, :]) & vy0[None, :], 1.0 - fy[None, :], 0.0)
           + jnp.where((hi == cy1[None, :]) & vy1[None, :], fy[None, :], 0.0))  # (h, P)

    return (WyT[:, None, :] * WxT[None, :, :]).reshape(h * w, h * w)


# ---------------------------------------------------------------------------
# Tile-size / device helpers
# ---------------------------------------------------------------------------
_DEF_VMEM_BYTES = 64 * 1024 * 1024  # v7x per-TensorCore VMEM (most restrictive)


def _vmem_capacity_bytes():
    try:
        return int(pltpu.get_tpu_info().vmem_capacity_bytes)
    except Exception:
        return _DEF_VMEM_BYTES


def _looks_like_two_core_chip():
    try:
        kind = (getattr(jax.devices()[0], "device_kind", "") or "").lower()
    except Exception:
        kind = ""
    return "v7" in kind


def _pick_group_size(rows, hw, vmem_budget, want_steps):
    """Output rows per grid step: multiple of 8, divides rows, fits VMEM."""
    if rows % 8 != 0:
        return rows, 1  # single full-array block (full dims satisfy (8,128) rule)
    per_row = 2 * hw * 2 + 2 * hw * 4       # dbl-buffered bf16 input + f32 output
    wfull_bytes = hw * hw * 2                # resident bf16 weight (x2 buffers)
    avail = max(vmem_budget - 2 * wfull_bytes, 8 * per_row)
    g_cap = max(8, (int(avail // per_row) // 8) * 8)

    candidates = [d for d in range(8, rows + 1, 8) if rows % d == 0 and d <= g_cap]
    if not candidates:
        return rows, 1
    for d in sorted(candidates, reverse=True):
        if rows // d >= want_steps:
            return d, rows // d
    d = max(candidates)
    return d, rows // d


# ---------------------------------------------------------------------------
# Public wrapper (JAX/Pallas port of CubeRandomShiftsAug.forward)
# ---------------------------------------------------------------------------
@partial(jax.jit, static_argnames=("pad",))
def cube_random_shifts_aug(x, pad, key):
    x = x.astype(jnp.float32)
    n, c, h, w = x.shape
    hw = h * w
    rows = n * c

    wfull = _fused_weights(h, w, pad, key).astype(jnp.bfloat16)     # (hw, hw)
    x_rows = x.reshape(rows, hw).astype(jnp.bfloat16)               # unpadded slab

    vmem_cap = _vmem_capacity_bytes()
    want_steps = 2 if _looks_like_two_core_chip() else 1
    group, steps = _pick_group_size(rows, hw, vmem_cap // 2, want_steps)

    cost = pl.CostEstimate(
        flops=2 * rows * hw * hw,
        transcendentals=0,
        bytes_accessed=rows * hw * 2 + hw * hw * 2 + rows * hw * 4,
    )
    vmem_limit = int(min(
        vmem_cap,
        max(32 * 1024 * 1024,
            2 * hw * hw * 2 + 4 * group * hw * 2 + 4 * group * hw * 4),
    ))

    if steps == 1:
        # Everything fits: no grid at all (avoids the 1-step serial pipeline
        # overhead on single-TC v5e/v6e).
        out = pl.pallas_call(
            _aug_matmul_kernel,
            out_shape=jax.ShapeDtypeStruct((rows, hw), jnp.float32),
            in_specs=[pl.BlockSpec(memory_space=pltpu.MemorySpace.VMEM),
                      pl.BlockSpec(memory_space=pltpu.MemorySpace.VMEM)],
            out_specs=pl.BlockSpec(memory_space=pltpu.MemorySpace.VMEM),
            compiler_params=pltpu.CompilerParams(vmem_limit_bytes=vmem_limit),
            cost_estimate=cost,
        )(x_rows, wfull)
    else:
        out = pl.pallas_call(
            _aug_matmul_kernel,
            out_shape=jax.ShapeDtypeStruct((rows, hw), jnp.float32),
            grid=(steps,),
            in_specs=[pl.BlockSpec((group, hw), lambda s: (s, 0)),
                      pl.BlockSpec((hw, hw), lambda s: (0, 0))],   # resident weight
            out_specs=pl.BlockSpec((group, hw), lambda s: (s, 0)),
            compiler_params=pltpu.CompilerParams(
                dimension_semantics=("parallel",),
                vmem_limit_bytes=vmem_limit),
            cost_estimate=cost,
        )(x_rows, wfull)

    return out.reshape(n, c, h, w)


# ---------------------------------------------------------------------------
# Pure-JAX f32 reference on the *padded* image (independent of the pad-folded
# weights used by the kernel) — checks both the sampling math and the folding.
# ---------------------------------------------------------------------------
def _reference_grid_sample(x, pad, key):
    x = x.astype(jnp.float32)
    n, c, h, w = x.shape
    Hp, Wp = h + 2 * pad, w + 2 * pad
    xpad = jnp.pad(x, ((0, 0), (0, 0), (pad, pad), (pad, pad)), mode="edge")

    ix, iy = _sample_positions(h, w, pad, key)
    x0i = jnp.floor(ix).astype(jnp.int32)
    fx = ix - jnp.floor(ix)
    y0i = jnp.floor(iy).astype(jnp.int32)
    fy = iy - jnp.floor(iy)

    wi = jnp.arange(Wp, dtype=jnp.int32)[:, None]
    hi = jnp.arange(Hp, dtype=jnp.int32)[:, None]
    WxT = (jnp.where(wi == x0i[None, :], 1.0 - fx[None, :], 0.0)
           + jnp.where(wi == x0i[None, :] + 1, fx[None, :], 0.0))   # (Wp, P)
    WyT = (jnp.where(hi == y0i[None, :], 1.0 - fy[None, :], 0.0)
           + jnp.where(hi == y0i[None, :] + 1, fy[None, :], 0.0))   # (Hp, P)

    out = jnp.einsum("bcij,ip,jp->bcp", xpad, WyT, WxT)
    return out.reshape(n, c, h, w)


if __name__ == "__main__":
    key = jax.random.PRNGKey(0)
    k_x, k_shift = jax.random.split(key)

    # small shapes consistent with the module: N=2, C=4, H=W=16, pad=2
    n, c, h, w, pad = 2, 4, 16, 16, 2
    x = jax.random.normal(k_x, (n, c, h, w), dtype=jnp.float32)

    y = cube_random_shifts_aug(x, pad=pad, key=k_shift)
    jax.block_until_ready(y)
    assert y.shape == (n, c, h, w) and y.dtype == jnp.float32

    # Differential check: kernel (pad folded into weights, bf16 MXU operands)
    # vs an f32 padded-image reference of the same sampling math.
    ref = _reference_grid_sample(x, pad, k_shift)
    max_err = float(jnp.max(jnp.abs(y - ref)))
    assert max_err < 5e-2, f"max abs error {max_err}"

    print("KERNEL_OK")
</pallas_src>

<mosaic_0001>
module attributes {stable_mosaic.version = 11 : i64} {
  func.func @_aug_matmul_kernel(%arg0: memref<8x256xbf16, #tpu.memory_space<vmem>>, %arg1: memref<256x256xbf16, #tpu.memory_space<vmem>>, %arg2: memref<8x256xf32, #tpu.memory_space<vmem>>) attributes {dimension_semantics = [], scalar_prefetch = 0 : i64, scratch_operands = 0 : i64, tpu.core_type = #tpu.core_type<tc>} {
    %c0 = arith.constant 0 : index
    %c0_0 = arith.constant 0 : index
    %0 = vector.load %arg0[%c0, %c0_0] : memref<8x256xbf16, #tpu.memory_space<vmem>>, vector<8x256xbf16>
    %c0_1 = arith.constant 0 : index
    %c0_2 = arith.constant 0 : index
    %1 = vector.load %arg1[%c0_1, %c0_2] : memref<256x256xbf16, #tpu.memory_space<vmem>>, vector<256x256xbf16>
    %cst = arith.constant dense<0.000000e+00> : vector<8x256xf32>
    %2 = tpu.matmul %0, %1, %cst {dimension_numbers = #tpu.dot_dimension_numbers<[1], [0], [0], [1], [0, 0, 1, 1], [], []>} : vector<8x256xbf16>, vector<256x256xbf16>, vector<8x256xf32> -> vector<8x256xf32>
    %c0_3 = arith.constant 0 : index
    %c0_4 = arith.constant 0 : index
    %3 = vector.load %arg2[%c0_3, %c0_4] : memref<8x256xf32, #tpu.memory_space<vmem>>, vector<8x256xf32>
    tpu.vector_store %arg2[%c0_3, %c0_4], %2 {strides = array<i32>} : memref<8x256xf32, #tpu.memory_space<vmem>>, vector<8x256xf32>,
    return
  }
}

</mosaic_0001>

<llo_original>
// kernel: cube_random_shifts_aug.1
$region0: #{cube_random_shifts_aug.1}
  #allocation0 [shape = 'u32[]', space=smem, size = 0x4, offset = 0x4, fixed_abs, tag = 'smem constant byte address 0x4 - core index']
  #allocation1 [shape = 'u32[72,128]{1,0:T(1,128)}', space=vmem, size = 0x9000, scoped, tag = 'internal scratch']
  %s0 = inlined_call_operand.vmem [shape: bf16[8,256], index: 0, kind: input, shape index: {}]
  %s1 = inlined_call_operand.vmem [shape: bf16[256,256], index: 1, kind: input, shape index: {}]
  %s2 = inlined_call_operand.vmem [shape: f32[8,256], index: 2, kind: output, shape index: {}]
  %s3 = sld [smem:[#allocation0]]
  $region18: #{cube_random_shifts_aug.1} parent=0
    _
  %s5 = ssub.s32 1, %s3
  %s6 = scalar_select 0, %s5, %s3
  // Predicated region
  $region2: #{cube_random_shifts_aug.1} parent=0 // pred_check
    _
  $region3: #{cube_random_shifts_aug.1} parent=0 // pred_check_branch
    %8 = sbr.rel (0) target = $region5
  $region4: #{cube_random_shifts_aug.1} parent=0 // pred_region
    _
  $region5: #{cube_random_shifts_aug.1} parent=0 // pred_fallthru
    _
  // Predicated region
  $region6: #{cube_random_shifts_aug.1} parent=0 // pred_check
    _
  $region7: #{cube_random_shifts_aug.1} parent=0 // pred_check_branch
    %10 = sbr.rel (0) target = $region9
  $region8: #{cube_random_shifts_aug.1} parent=0 // pred_region
    _
  $region9: #{cube_random_shifts_aug.1} parent=0 // pred_fallthru
    _
  %v11 = vld [vmem:[%s0] sm:$0xff]
  %v12 = vld [vmem:[%s1] sm:$0xff]
  %v13 = vld [vmem:[%s1 + $0x8] sm:$0xff]
  %v14 = vld [vmem:[%s1 + $0x10] sm:$0xff]
  %v15 = vld [vmem:[%s1 + $0x18] sm:$0xff]
  %v16 = vld [vmem:[%s1 + $0x20] sm:$0xff]
  %v17 = vld [vmem:[%s1 + $0x28] sm:$0xff]
  %v18 = vld [vmem:[%s1 + $0x30] sm:$0xff]
  %v19 = vld [vmem:[%s1 + $0x38] sm:$0xff]
  %v20 = vld [vmem:[%s1 + $0x40] sm:$0xff]
  %v21 = vld [vmem:[%s1 + $0x48] sm:$0xff]
  %v22 = vld [vmem:[%s1 + $0x50] sm:$0xff]
  %v23 = vld [vmem:[%s1 + $0x58] sm:$0xff]
  %v24 = vld [vmem:[%s1 + $0x60] sm:$0xff]
  %v25 = vld [vmem:[%s1 + $0x68] sm:$0xff]
  %v26 = vld [vmem:[%s1 + $0x70] sm:$0xff]
  %v27 = vld [vmem:[%s1 + $0x78] sm:$0xff]
  %v28 = vld [vmem:[%s1 + $0x80] sm:$0xff]
  %v29 = vld [vmem:[%s1 + $0x88] sm:$0xff]
  %v30 = vld [vmem:[%s1 + $0x90] sm:$0xff]
  %v31 = vld [vmem:[%s1 + $0x98] sm:$0xff]
  %v32 = vld [vmem:[%s1 + $0xa0] sm:$0xff]
  %v33 = vld [vmem:[%s1 + $0xa8] sm:$0xff]
  %v34 = vld [vmem:[%s1 + $0xb0] sm:$0xff]
  %v35 = vld [vmem:[%s1 + $0xb8] sm:$0xff]
  %v36 = vld [vmem:[%s1 + $0xc0] sm:$0xff]
  %v37 = vld [vmem:[%s1 + $0xc8] sm:$0xff]
  %v38 = vld [vmem:[%s1 + $0xd0] sm:$0xff]
  %v39 = vld [vmem:[%s1 + $0xd8] sm:$0xff]
  %v40 = vld [vmem:[%s1 + $0xe0] sm:$0xff]
  %v41 = vld [vmem:[%s1 + $0xe8] sm:$0xff]
  %v42 = vld [vmem:[%s1 + $0xf0] sm:$0xff]
  %v43 = vld [vmem:[%s1 + $0xf8] sm:$0xff]
  %v45 = vunpack.c.l.b16 %v11
  %v46 = vunpack.c.h.b16 %v11
  %v47 = vpack.c.b16 %v45, %v45
  %v48 = vpack.c.b16 %v46, %v46
  %v83 = vunpack.c.l.b16 %v12
  %v84 = vunpack.c.h.b16 %v12
  %v85 = vunpack.c.l.b16 %v13
  %v86 = vunpack.c.h.b16 %v13
  %v87 = vunpack.c.l.b16 %v14
  %v88 = vunpack.c.h.b16 %v14
  %v89 = vunpack.c.l.b16 %v15
  %v90 = vunpack.c.h.b16 %v15
  %v91 = vunpack.c.l.b16 %v16
  %v92 = vunpack.c.h.b16 %v16
  %v93 = vunpack.c.l.b16 %v17
  %v94 = vunpack.c.h.b16 %v17
  %v95 = vunpack.c.l.b16 %v18
  %v96 = vunpack.c.h.b16 %v18
  %v97 = vunpack.c.l.b16 %v19
  %v98 = vunpack.c.h.b16 %v19
  %v99 = vunpack.c.l.b16 %v20
  %v100 = vunpack.c.h.b16 %v20
  %v101 = vunpack.c.l.b16 %v21
  %v102 = vunpack.c.h.b16 %v21
  %v103 = vunpack.c.l.b16 %v22
  %v104 = vunpack.c.h.b16 %v22
  %v105 = vunpack.c.l.b16 %v23
  %v106 = vunpack.c.h.b16 %v23
  %v107 = vunpack.c.l.b16 %v24
  %v108 = vunpack.c.h.b16 %v24
  %v109 = vunpack.c.l.b16 %v25
  %v110 = vunpack.c.h.b16 %v25
  %v111 = vunpack.c.l.b16 %v26
  %v112 = vunpack.c.h.b16 %v26
  %v113 = vunpack.c.l.b16 %v27
  %v114 = vunpack.c.h.b16 %v27
  %v115 = vunpack.c.l.b16 %v28
  %v116 = vunpack.c.h.b16 %v28
  %v117 = vunpack.c.l.b16 %v29
  %v118 = vunpack.c.h.b16 %v29
  %v119 = vunpack.c.l.b16 %v30
  %v120 = vunpack.c.h.b16 %v30
  %v121 = vunpack.c.l.b16 %v31
  %v122 = vunpack.c.h.b16 %v31
  %v123 = vunpack.c.l.b16 %v32
  %v124 = vunpack.c.h.b16 %v32
  %v125 = vunpack.c.l.b16 %v33
  %v126 = vunpack.c.h.b16 %v33
  %v127 = vunpack.c.l.b16 %v34
  %v128 = vunpack.c.h.b16 %v34
  %v129 = vunpack.c.l.b16 %v35
  %v130 = vunpack.c.h.b16 %v35
  %v131 = vunpack.c.l.b16 %v36
  %v132 = vunpack.c.h.b16 %v36
  %v133 = vunpack.c.l.b16 %v37
  %v134 = vunpack.c.h.b16 %v37
  %v135 = vunpack.c.l.b16 %v38
  %v136 = vunpack.c.h.b16 %v38
  %v137 = vunpack.c.l.b16 %v39
  %v138 = vunpack.c.h.b16 %v39
  %v139 = vunpack.c.l.b16 %v40
  %v140 = vunpack.c.h.b16 %v40
  %v141 = vunpack.c.l.b16 %v41
  %v142 = vunpack.c.h.b16 %v41
  %v143 = vunpack.c.l.b16 %v42
  %v144 = vunpack.c.h.b16 %v42
  %v145 = vunpack.c.l.b16 %v43
  %v146 = vunpack.c.h.b16 %v43
  %v147 = vpack.c.b16 %v85, %v83
  %v148 = vpack.c.b16 %v86, %v84
  %v149 = vpack.c.b16 %v89, %v87
  %v150 = vpack.c.b16 %v90, %v88
  %v151 = vpack.c.b16 %v93, %v91
  %v152 = vpack.c.b16 %v94, %v92
  %v153 = vpack.c.b16 %v97, %v95
  %v154 = vpack.c.b16 %v98, %v96
  %v155 = vpack.c.b16 %v101, %v99
  %v156 = vpack.c.b16 %v102, %v100
  %v157 = vpack.c.b16 %v105, %v103
  %v158 = vpack.c.b16 %v106, %v104
  %v159 = vpack.c.b16 %v109, %v107
  %v160 = vpack.c.b16 %v110, %v108
  %v161 = vpack.c.b16 %v113, %v111
  %v162 = vpack.c.b16 %v114, %v112
  %v163 = vpack.c.b16 %v117, %v115
  %v164 = vpack.c.b16 %v118, %v116
  %v165 = vpack.c.b16 %v121, %v119
  %v166 = vpack.c.b16 %v122, %v120
  %v167 = vpack.c.b16 %v125, %v123
  %v168 = vpack.c.b16 %v126, %v124
  %v169 = vpack.c.b16 %v129, %v127
  %v170 = vpack.c.b16 %v130, %v128
  %v171 = vpack.c.b16 %v133, %v131
  %v172 = vpack.c.b16 %v134, %v132
  %v173 = vpack.c.b16 %v137, %v135
  %v174 = vpack.c.b16 %v138, %v136
  %v175 = vpack.c.b16 %v141, %v139
  %v176 = vpack.c.b16 %v142, %v140
  %v177 = vpack.c.b16 %v145, %v143
  %v178 = vpack.c.b16 %v146, %v144
  %211 = vmatpush.bf16.msra.mxu0 %v161
  %212 = vmatpush.bf16.msra.mxu0 %v159
  %213 = vmatpush.bf16.msra.mxu0 %v157
  %214 = vmatpush.bf16.msra.mxu0 %v155
  %215 = vmatpush.bf16.msra.mxu0 %v153
  %216 = vmatpush.bf16.msra.mxu0 %v151
  %217 = vmatpush.bf16.msra.mxu0 %v149
  %218 = vmatpush.bf16.msra.mxu0 %v147
  %219 = vmatmul.bf16.gmra.mxu0 %v47
  %v220 = vpop.f32.mrf.mxu0
  %v221 = vadd.f32 0.0, %v220
  %v222 = vpop.f32.mrf.mxu0
  %223 = vdwg.mxu0
  %224 = vmatpush.bf16.msra.mxu0 %v177
  %225 = vmatpush.bf16.msra.mxu0 %v175
  %226 = vmatpush.bf16.msra.mxu0 %v173
  %227 = vmatpush.bf16.msra.mxu0 %v171
  %228 = vmatpush.bf16.msra.mxu0 %v169
  %229 = vmatpush.bf16.msra.mxu0 %v167
  %230 = vmatpush.bf16.msra.mxu0 %v165
  %231 = vmatpush.bf16.msra.mxu0 %v163
  %232 = vmatmul.bf16.gmra.mxu0 %v48
  %v233 = vpop.f32.mrf.mxu0
  %v234 = vadd.f32 %v221, %v233
  %v235 = vpop.f32.mrf.mxu0
  %236 = vdwg.mxu0
  %237 = vmatpush.bf16.msra.mxu0 %v162
  %238 = vmatpush.bf16.msra.mxu0 %v160
  %239 = vmatpush.bf16.msra.mxu0 %v158
  %240 = vmatpush.bf16.msra.mxu0 %v156
  %241 = vmatpush.bf16.msra.mxu0 %v154
  %242 = vmatpush.bf16.msra.mxu0 %v152
  %243 = vmatpush.bf16.msra.mxu0 %v150
  %244 = vmatpush.bf16.msra.mxu0 %v148
  %245 = vmatmul.bf16.gmra.mxu0 %v47
  %v246 = vpop.f32.mrf.mxu0
  %v247 = vadd.f32 0.0, %v246
  %v248 = vpop.f32.mrf.mxu0
  %249 = vdwg.mxu0
  %250 = vmatpush.bf16.msra.mxu0 %v178
  %251 = vmatpush.bf16.msra.mxu0 %v176
  %252 = vmatpush.bf16.msra.mxu0 %v174
  %253 = vmatpush.bf16.msra.mxu0 %v172
  %254 = vmatpush.bf16.msra.mxu0 %v170
  %255 = vmatpush.bf16.msra.mxu0 %v168
  %256 = vmatpush.bf16.msra.mxu0 %v166
  %257 = vmatpush.bf16.msra.mxu0 %v164
  %258 = vmatmul.bf16.gmra.mxu0 %v48
  %v259 = vpop.f32.mrf.mxu0
  %v260 = vadd.f32 %v247, %v259
  %v261 = vpop.f32.mrf.mxu0
  %262 = vdwg.mxu0
  %263 = vst [vmem:[%s2] sm:$0xff] %v234
  %264 = vst [vmem:[%s2 + $0x8] sm:$0xff] %v260
  // Predicated region
  $region10: #{cube_random_shifts_aug.1} parent=0 // pred_check
    _
  $region11: #{cube_random_shifts_aug.1} parent=0 // pred_check_branch
    %266 = sbr.rel (0) target = $region13
  $region12: #{cube_random_shifts_aug.1} parent=0 // pred_region
    _
  $region13: #{cube_random_shifts_aug.1} parent=0 // pred_fallthru
    _
  // Predicated region
  $region14: #{cube_random_shifts_aug.1} parent=0 // pred_check
    _
  $region15: #{cube_random_shifts_aug.1} parent=0 // pred_check_branch
    %268 = sbr.rel (0) target = $region17
  $region16: #{cube_random_shifts_aug.1} parent=0 // pred_region
    _
  $region17: #{cube_random_shifts_aug.1} parent=0 // pred_fallthru
    _

</llo_original>
